<compile_context>
chip_gen: v5e
topology: v5e:2x2
jax: 0.10.0
libtpu: 0.0.40
codegen_flags: <defaults>
</compile_context>

<pallas_src>
import numpy as np
import jax
import jax.numpy as jnp
from jax.experimental import pallas as pl
from jax.experimental.pallas import tpu as pltpu


def graphnet_kernel(ids_ref, x_ref, w1_ref, b1_ref, w2_ref, b2_ref,
                    o_ref, acc_ref, cnt_ref):
    """Fused gp_avg -> Linear -> BN(eval, folded) -> ReLU -> Linear.

    ids_ref : [1, TN]        int32 graph id per node (-1 = padding node)
    x_ref   : [TN, F]        bf16 node-feature tile
    w1_ref  : [F, H]         first Linear weight with BN scale folded in
    b1_ref  : [1, H]         first Linear bias with BN scale/shift folded in
    w2_ref  : [H, C_pad]     second Linear weight (classes zero-padded to 128)
    b2_ref  : [1, C_pad]     second Linear bias
    o_ref   : [G_pad, C_pad] output logits (resident across the node grid)
    acc_ref : [G_pad, F]     f32 segment-sum accumulator (VMEM scratch)
    cnt_ref : [G_pad, 1]     f32 per-graph node count (VMEM scratch)
    """
    k = pl.program_id(0)

    @pl.when(k == 0)
    def _init():
        acc_ref[...] = jnp.zeros_like(acc_ref)
        cnt_ref[...] = jnp.zeros_like(cnt_ref)

    g_pad = acc_ref.shape[0]
    tn = x_ref.shape[0]

    # Build the per-tile pooling mask in-kernel from the int32 batch ids.
    ids = ids_ref[...]                                            # (1, TN)
    gid = jax.lax.broadcasted_iota(jnp.int32, (g_pad, tn), 0)     # (G_pad, TN)
    eq = gid == ids                                               # bool mask
    mask = eq.astype(jnp.bfloat16)

    # Masked segment-sum on the MXU (bf16 operands, f32 accumulation).
    acc_ref[...] += jnp.dot(mask, x_ref[...],
                            preferred_element_type=jnp.float32)   # [G_pad, F]
    cnt_ref[...] += jnp.sum(eq.astype(jnp.float32), axis=-1, keepdims=True)

    @pl.when(k == pl.num_programs(0) - 1)
    def _epilogue():
        # gp_avg: mean = sum * (1/count); empty graphs clamp count to 1 -> 0.
        inv = pl.reciprocal(jnp.maximum(cnt_ref[...], 1.0), approx=True)
        pooled = acc_ref[...] * inv                                # [G_pad, F]

        # f_32 + b (BatchNorm folded into w1/b1 in eval mode)
        h = jnp.dot(pooled, w1_ref[...],
                    preferred_element_type=jnp.float32) + b1_ref[...]
        # r: ReLU(inplace=True); d_0.5: Dropout is identity at inference.
        h = jnp.maximum(h, 0.0)
        # f_10
        o_ref[...] = jnp.dot(h, w2_ref[...],
                             preferred_element_type=jnp.float32) + b2_ref[...]


def graph_network_forward(x, batch, num_graphs, params, *, tile_n=256):
    """Pools node features per graph and applies the MLP head in one kernel."""
    N, F = x.shape
    H = params["w1"].shape[1]
    C = params["w2"].shape[1]

    # Fold BatchNorm1d (eval) into the first Linear: exact in eval mode.
    eps = 1e-5
    s = params["gamma"] / jnp.sqrt(params["run_var"] + eps)
    t = params["beta"] - params["run_mean"] * s
    w1 = (params["w1"] * s[None, :]).astype(jnp.float32)           # [F, H]
    b1 = (params["b1"] * s + t).reshape(1, H).astype(jnp.float32)  # [1, H]

    # Lane-dense output: pad classes to 128 lanes, graphs to 8 sublanes.
    c_pad = max(128, ((C + 127) // 128) * 128)
    g_pad = max(8, ((num_graphs + 7) // 8) * 8)
    w2 = jnp.zeros((H, c_pad), jnp.float32).at[:, :C].set(
        params["w2"].astype(jnp.float32))
    b2 = jnp.zeros((1, c_pad), jnp.float32).at[0, :C].set(
        params["b2"].astype(jnp.float32))

    # Pad nodes to a multiple of the tile; padded ids = -1 never match a graph.
    n_pad = ((N + tile_n - 1) // tile_n) * tile_n
    x_p = jnp.zeros((n_pad, F), jnp.bfloat16).at[:N].set(x.astype(jnp.bfloat16))
    ids = jnp.full((1, n_pad), -1, jnp.int32).at[0, :N].set(
        batch.astype(jnp.int32))

    grid = (n_pad // tile_n,)
    out = pl.pallas_call(
        graphnet_kernel,
        out_shape=jax.ShapeDtypeStruct((g_pad, c_pad), jnp.float32),
        grid_spec=pltpu.PrefetchScalarGridSpec(
            num_scalar_prefetch=0,
            grid=grid,
            in_specs=[
                pl.BlockSpec((1, tile_n), lambda k: (0, k)),   # batch ids
                pl.BlockSpec((tile_n, F), lambda k: (k, 0)),   # node features
                pl.BlockSpec((F, H), lambda k: (0, 0)),        # w1 (resident)
                pl.BlockSpec((1, H), lambda k: (0, 0)),        # b1
                pl.BlockSpec((H, c_pad), lambda k: (0, 0)),    # w2
                pl.BlockSpec((1, c_pad), lambda k: (0, 0)),    # b2
            ],
            out_specs=pl.BlockSpec((g_pad, c_pad), lambda k: (0, 0)),
            scratch_shapes=[
                pltpu.VMEM((g_pad, F), jnp.float32),   # pooled-sum accumulator
                pltpu.VMEM((g_pad, 1), jnp.float32),   # per-graph counts
            ],
        ),
        compiler_params=pltpu.CompilerParams(
            dimension_semantics=("arbitrary",)),       # node axis = reduction
    )(ids, x_p, w1, b1, w2, b2)

    return out[:num_graphs, :C]


def reference_forward(x, batch, num_graphs, params):
    """Pure-JAX f32 reference mirroring the PyTorch forward in eval mode."""
    G = num_graphs
    onehot = (batch[None, :] == jnp.arange(G)[:, None]).astype(jnp.float32)
    counts = jnp.maximum(onehot.sum(axis=1, keepdims=True), 1.0)
    pooled = (onehot @ x) / counts
    h = pooled @ params["w1"] + params["b1"]
    eps = 1e-5
    h = (h - params["run_mean"]) / jnp.sqrt(params["run_var"] + eps)
    h = h * params["gamma"] + params["beta"]
    h = jnp.maximum(h, 0.0)
    return h @ params["w2"] + params["b2"]


if __name__ == "__main__":
    # Small deterministic problem: 64 nodes, 16 input features, 4 graphs,
    # hidden 32, 10 output classes (16 nodes per graph).
    N, F, G, H, C = 64, 16, 4, 32, 10

    key = jax.random.PRNGKey(0)
    kx, k1, k2, k3, k4, k5, k6, k7, k8 = jax.random.split(key, 9)

    x = jax.random.normal(kx, (N, F), dtype=jnp.float32)
    batch = jnp.repeat(jnp.arange(G, dtype=jnp.int32), N // G)

    params = {
        # Linear(F, H) — stored [in, out] (transpose of torch's [out, in]).
        "w1": jax.random.normal(k1, (F, H), dtype=jnp.float32) / np.sqrt(F),
        "b1": jax.random.normal(k2, (H,), dtype=jnp.float32) * 0.1,
        # BatchNorm1d(H) affine params + running stats.
        "gamma": 1.0 + 0.1 * jax.random.normal(k3, (H,), dtype=jnp.float32),
        "beta": 0.1 * jax.random.normal(k4, (H,), dtype=jnp.float32),
        "run_mean": 0.1 * jax.random.normal(k5, (H,), dtype=jnp.float32),
        "run_var": 1.0 + 0.1 * jnp.abs(
            jax.random.normal(k6, (H,), dtype=jnp.float32)),
        # Linear(H, C)
        "w2": jax.random.normal(k7, (H, C), dtype=jnp.float32) / np.sqrt(H),
        "b2": jax.random.normal(k8, (C,), dtype=jnp.float32) * 0.1,
    }

    out = graph_network_forward(x, batch, G, params)
    out = jax.block_until_ready(out)

    ref = reference_forward(x, batch, G, params)
    assert out.shape == (G, C)
    # bf16 node-feature operands (f32 accumulation) => loosened tolerance vs
    # the pure-f32 reference.
    assert np.allclose(np.asarray(out), np.asarray(ref), rtol=3e-2, atol=3e-2)

    print("KERNEL_OK")
</pallas_src>

<mosaic_0001>
module attributes {stable_mosaic.version = 11 : i64} {
  func.func @graphnet_kernel(%arg0: i32, %arg1: memref<1x256xi32, #tpu.memory_space<vmem>>, %arg2: memref<256x16xbf16, #tpu.memory_space<vmem>>, %arg3: memref<16x32xf32, #tpu.memory_space<vmem>>, %arg4: memref<1x32xf32, #tpu.memory_space<vmem>>, %arg5: memref<32x128xf32, #tpu.memory_space<vmem>>, %arg6: memref<1x128xf32, #tpu.memory_space<vmem>>, %arg7: memref<8x128xf32, #tpu.memory_space<vmem>>, %arg8: memref<8x16xf32, #tpu.memory_space<vmem>>, %arg9: memref<8x1xf32, #tpu.memory_space<vmem>>) attributes {dimension_semantics = [#tpu.dimension_semantics<arbitrary>], iteration_bounds = array<i64: 1>, scalar_prefetch = 0 : i64, scratch_operands = 2 : i64, tpu.core_type = #tpu.core_type<tc>, window_params = [{transform_indices = @transform_0, window_bounds = array<i64: 1, 256>}, {transform_indices = @transform_1, window_bounds = array<i64: 256, 16>}, {pipeline_mode = #tpu.pipeline_mode<synchronous>, transform_indices = @transform_2, window_bounds = array<i64: 16, 32>}, {pipeline_mode = #tpu.pipeline_mode<synchronous>, transform_indices = @transform_3, window_bounds = array<i64: 1, 32>}, {pipeline_mode = #tpu.pipeline_mode<synchronous>, transform_indices = @transform_4, window_bounds = array<i64: 32, 128>}, {pipeline_mode = #tpu.pipeline_mode<synchronous>, transform_indices = @transform_5, window_bounds = array<i64: 1, 128>}, {pipeline_mode = #tpu.pipeline_mode<synchronous>, transform_indices = @transform_6, window_bounds = array<i64: 8, 128>}]} {
    %c0_i32 = arith.constant 0 : i32
    %0 = arith.cmpi eq, %arg0, %c0_i32 : i32
    %1 = arith.extui %0 : i1 to i32
    %c0_i32_0 = arith.constant 0 : i32
    %2 = arith.cmpi ne, %1, %c0_i32_0 : i32
    scf.if %2 {
      %cst_15 = arith.constant 0.000000e+00 : f32
      %25 = vector.broadcast %cst_15 : f32 to vector<8x16xf32>
      %c0_16 = arith.constant 0 : index
      %c0_17 = arith.constant 0 : index
      %26 = vector.load %arg8[%c0_16, %c0_17] : memref<8x16xf32, #tpu.memory_space<vmem>>, vector<8x16xf32>
      tpu.vector_store %arg8[%c0_16, %c0_17], %25 {strides = array<i32>} : memref<8x16xf32, #tpu.memory_space<vmem>>, vector<8x16xf32>,
      %cst_18 = arith.constant 0.000000e+00 : f32
      %27 = vector.broadcast %cst_18 : f32 to vector<8x1xf32>
      %c0_19 = arith.constant 0 : index
      %c0_20 = arith.constant 0 : index
      %28 = vector.load %arg9[%c0_19, %c0_20] : memref<8x1xf32, #tpu.memory_space<vmem>>, vector<8x1xf32>
      tpu.vector_store %arg9[%c0_19, %c0_20], %27 {strides = array<i32>} : memref<8x1xf32, #tpu.memory_space<vmem>>, vector<8x1xf32>,
    } else {
    }
    %c0 = arith.constant 0 : index
    %c0_1 = arith.constant 0 : index
    %3 = vector.load %arg1[%c0, %c0_1] : memref<1x256xi32, #tpu.memory_space<vmem>>, vector<1x256xi32>
    %4 = tpu.iota {dimensions = array<i32: 0>} : vector<8x256xi32>
    %5 = vector.broadcast %3 : vector<1x256xi32> to vector<8x256xi32>
    %6 = arith.cmpi eq, %4, %5 : vector<8x256xi32>
    %7 = arith.extui %6 : vector<8x256xi1> to vector<8x256xi32>
    %8 = arith.sitofp %7 : vector<8x256xi32> to vector<8x256xf32>
    %9 = arith.truncf %8 : vector<8x256xf32> to vector<8x256xbf16>
    %c0_2 = arith.constant 0 : index
    %c0_3 = arith.constant 0 : index
    %10 = vector.load %arg8[%c0_2, %c0_3] : memref<8x16xf32, #tpu.memory_space<vmem>>, vector<8x16xf32>
    %c0_4 = arith.constant 0 : index
    %c0_5 = arith.constant 0 : index
    %11 = vector.load %arg2[%c0_4, %c0_5] : memref<256x16xbf16, #tpu.memory_space<vmem>>, vector<256x16xbf16>
    %cst = arith.constant dense<0.000000e+00> : vector<8x16xf32>
    %12 = tpu.matmul %9, %11, %cst {dimension_numbers = #tpu.dot_dimension_numbers<[1], [0], [0], [1], [0, 0, 1, 1], [], []>} : vector<8x256xbf16>, vector<256x16xbf16>, vector<8x16xf32> -> vector<8x16xf32>
    %13 = arith.addf %10, %12 : vector<8x16xf32>
    %c0_6 = arith.constant 0 : index
    %c0_7 = arith.constant 0 : index
    %14 = vector.load %arg8[%c0_6, %c0_7] : memref<8x16xf32, #tpu.memory_space<vmem>>, vector<8x16xf32>
    tpu.vector_store %arg8[%c0_6, %c0_7], %13 {strides = array<i32>} : memref<8x16xf32, #tpu.memory_space<vmem>>, vector<8x16xf32>,
    %c0_8 = arith.constant 0 : index
    %c0_9 = arith.constant 0 : index
    %15 = vector.load %arg9[%c0_8, %c0_9] : memref<8x1xf32, #tpu.memory_space<vmem>>, vector<8x1xf32>
    %16 = arith.extui %6 : vector<8x256xi1> to vector<8x256xi32>
    %17 = arith.sitofp %16 : vector<8x256xi32> to vector<8x256xf32>
    %cst_10 = arith.constant dense<0.000000e+00> : vector<8xf32>
    %18 = vector.multi_reduction <add>, %17, %cst_10 [1] : vector<8x256xf32> to vector<8xf32>
    %19 = vector.shape_cast %18 : vector<8xf32> to vector<8x1xf32>
    %20 = arith.addf %15, %19 : vector<8x1xf32>
    %c0_11 = arith.constant 0 : index
    %c0_12 = arith.constant 0 : index
    %21 = vector.load %arg9[%c0_11, %c0_12] : memref<8x1xf32, #tpu.memory_space<vmem>>, vector<8x1xf32>
    tpu.vector_store %arg9[%c0_11, %c0_12], %20 {strides = array<i32>} : memref<8x1xf32, #tpu.memory_space<vmem>>, vector<8x1xf32>,
    %c0_i32_13 = arith.constant 0 : i32
    %22 = arith.cmpi eq, %arg0, %c0_i32_13 : i32
    %23 = arith.extui %22 : i1 to i32
    %c0_i32_14 = arith.constant 0 : i32
    %24 = arith.cmpi ne, %23, %c0_i32_14 : i32
    scf.if %24 {
      %c0_15 = arith.constant 0 : index
      %c0_16 = arith.constant 0 : index
      %25 = vector.load %arg9[%c0_15, %c0_16] : memref<8x1xf32, #tpu.memory_space<vmem>>, vector<8x1xf32>
      %cst_17 = arith.constant 1.000000e+00 : f32
      %26 = vector.broadcast %cst_17 : f32 to vector<8x1xf32>
      %27 = arith.maximumf %25, %26 : vector<8x1xf32>
      %28 = tpu.reciprocal %27 {approx = true} : vector<8x1xf32> -> vector<8x1xf32>
      %c0_18 = arith.constant 0 : index
      %c0_19 = arith.constant 0 : index
      %29 = vector.load %arg8[%c0_18, %c0_19] : memref<8x16xf32, #tpu.memory_space<vmem>>, vector<8x16xf32>
      %30 = vector.broadcast %28 : vector<8x1xf32> to vector<8x16xf32>
      %31 = arith.mulf %29, %30 : vector<8x16xf32>
      %c0_20 = arith.constant 0 : index
      %c0_21 = arith.constant 0 : index
      %32 = vector.load %arg3[%c0_20, %c0_21] : memref<16x32xf32, #tpu.memory_space<vmem>>, vector<16x32xf32>
      %cst_22 = arith.constant dense<0.000000e+00> : vector<8x32xf32>
      %33 = tpu.matmul %31, %32, %cst_22 {dimension_numbers = #tpu.dot_dimension_numbers<[1], [0], [0], [1], [0, 0, 1, 1], [], []>} : vector<8x16xf32>, vector<16x32xf32>, vector<8x32xf32> -> vector<8x32xf32>
      %c0_23 = arith.constant 0 : index
      %c0_24 = arith.constant 0 : index
      %34 = vector.load %arg4[%c0_23, %c0_24] : memref<1x32xf32, #tpu.memory_space<vmem>>, vector<1x32xf32>
      %35 = vector.broadcast %34 : vector<1x32xf32> to vector<8x32xf32>
      %36 = arith.addf %33, %35 : vector<8x32xf32>
      %cst_25 = arith.constant 0.000000e+00 : f32
      %37 = vector.broadcast %cst_25 : f32 to vector<8x32xf32>
      %38 = arith.maximumf %36, %37 : vector<8x32xf32>
      %c0_26 = arith.constant 0 : index
      %c0_27 = arith.constant 0 : index
      %39 = vector.load %arg5[%c0_26, %c0_27] : memref<32x128xf32, #tpu.memory_space<vmem>>, vector<32x128xf32>
      %cst_28 = arith.constant dense<0.000000e+00> : vector<8x128xf32>
      %40 = tpu.matmul %38, %39, %cst_28 {dimension_numbers = #tpu.dot_dimension_numbers<[1], [0], [0], [1], [0, 0, 1, 1], [], []>} : vector<8x32xf32>, vector<32x128xf32>, vector<8x128xf32> -> vector<8x128xf32>
      %c0_29 = arith.constant 0 : index
      %c0_30 = arith.constant 0 : index
      %41 = vector.load %arg6[%c0_29, %c0_30] : memref<1x128xf32, #tpu.memory_space<vmem>>, vector<1x128xf32>
      %42 = vector.broadcast %41 : vector<1x128xf32> to vector<8x128xf32>
      %43 = arith.addf %40, %42 : vector<8x128xf32>
      %c0_31 = arith.constant 0 : index
      %c0_32 = arith.constant 0 : index
      %44 = vector.load %arg7[%c0_31, %c0_32] : memref<8x128xf32, #tpu.memory_space<vmem>>, vector<8x128xf32>
      tpu.vector_store %arg7[%c0_31, %c0_32], %43 {strides = array<i32>} : memref<8x128xf32, #tpu.memory_space<vmem>>, vector<8x128xf32>,
    } else {
    }
    return
  }
  func.func @transform_0(%arg0: i32) -> (i32, i32) {
    %c0_i32 = arith.constant 0 : i32
    %c0_i32_0 = arith.constant 0 : i32
    return %c0_i32, %arg0 : i32, i32
  }
  func.func @transform_1(%arg0: i32) -> (i32, i32) {
    %c0_i32 = arith.constant 0 : i32
    %c0_i32_0 = arith.constant 0 : i32
    return %arg0, %c0_i32 : i32, i32
  }
  func.func @transform_2(%arg0: i32) -> (i32, i32) {
    %c0_i32 = arith.constant 0 : i32
    %c0_i32_0 = arith.constant 0 : i32
    %c0_i32_1 = arith.constant 0 : i32
    return %c0_i32, %c0_i32_0 : i32, i32
  }
  func.func @transform_3(%arg0: i32) -> (i32, i32) {
    %c0_i32 = arith.constant 0 : i32
    %c0_i32_0 = arith.constant 0 : i32
    %c0_i32_1 = arith.constant 0 : i32
    return %c0_i32, %c0_i32_0 : i32, i32
  }
  func.func @transform_4(%arg0: i32) -> (i32, i32) {
    %c0_i32 = arith.constant 0 : i32
    %c0_i32_0 = arith.constant 0 : i32
    %c0_i32_1 = arith.constant 0 : i32
    return %c0_i32, %c0_i32_0 : i32, i32
  }
  func.func @transform_5(%arg0: i32) -> (i32, i32) {
    %c0_i32 = arith.constant 0 : i32
    %c0_i32_0 = arith.constant 0 : i32
    %c0_i32_1 = arith.constant 0 : i32
    return %c0_i32, %c0_i32_0 : i32, i32
  }
  func.func @transform_6(%arg0: i32) -> (i32, i32) {
    %c0_i32 = arith.constant 0 : i32
    %c0_i32_0 = arith.constant 0 : i32
    %c0_i32_1 = arith.constant 0 : i32
    return %c0_i32, %c0_i32_0 : i32, i32
  }
}

</mosaic_0001>

<llo_original>
// kernel: tpu_custom_call.1
$region0: #{tpu_custom_call.1}
  #allocation0 [shape = 'u32[]', space=smem, size = 0x4, offset = 0x4, fixed_abs, tag = 'smem constant byte address 0x4 - core index']
  #allocation1 [shape = 'u32[72,128]{1,0:T(1,128)}', space=vmem, size = 0x9000, scoped, tag = 'internal scratch']
  #allocation2 [shape = 'f32[8,16]{1,0:T(8,128)}', space=vmem, size = 0x1000, scoped, tag = 'scratch operand']
  #allocation3 [shape = 'f32[8,1]{1,0:T(8,128)}', space=vmem, size = 0x1000, scoped, tag = 'scratch operand']
  %s0 = inlined_call_operand.vmem [shape: s32[1,256], index: 0, kind: input, shape index: {}]
  %s1 = inlined_call_operand.vmem [shape: bf16[256,16], index: 1, kind: input, shape index: {}]
  %s2 = inlined_call_operand.vmem [shape: f32[16,32], index: 2, kind: input, shape index: {}]
  %s3 = inlined_call_operand.vmem [shape: f32[1,32], index: 3, kind: input, shape index: {}]
  %s4 = inlined_call_operand.vmem [shape: f32[32,128], index: 4, kind: input, shape index: {}]
  %s5 = inlined_call_operand.vmem [shape: f32[1,128], index: 5, kind: input, shape index: {}]
  %s6 = inlined_call_operand.hbm [shape: f32[8,128], index: 6, kind: output, shape index: {}]
  %s7 = sld [smem:[#allocation0]]
  $region42: #{tpu_custom_call.1} parent=0
    _
  %s9 = ssub.s32 1, %s7
  %s10 = scalar_select 0, %s9, %s7
  $region1: #{tpu_custom_call.1} parent=0
    #allocation4 [shape = 'u8[4096]{0}', space=vmem, size = 0x1000, scoped, tag = 'output window, operand 0, single buffered']
    #allocation5 [shape = 's32[1]{0}', space=sflag, size = 0x4, scoped, tag = 'scoped memory for tpu_custom_call.1']
    %11 = vsyncpa [#allocation5], 0
    // Predicated region
    $region2: #{tpu_custom_call.1} parent=1 // pred_check
      _
    $region3: #{tpu_custom_call.1} parent=1 // pred_check_branch
      %13 = sbr.rel (0) target = $region5
    $region4: #{tpu_custom_call.1} parent=1 // pred_region
      _
    $region5: #{tpu_custom_call.1} parent=1 // pred_fallthru
      _
    // Predicated region
    $region6: #{tpu_custom_call.1} parent=1 // pred_check
      _
    $region7: #{tpu_custom_call.1} parent=1 // pred_check_branch
      %15 = sbr.rel (0) target = $region9
    $region8: #{tpu_custom_call.1} parent=1 // pred_region
      _
    $region9: #{tpu_custom_call.1} parent=1 // pred_fallthru
      _
    // Predicated region
    $region10: #{tpu_custom_call.1} parent=1 // pred_check
      _
    $region11: #{tpu_custom_call.1} parent=1 // pred_check_branch
      %17 = sbr.rel (0) target = $region13
    $region12: #{tpu_custom_call.1} parent=1 // pred_region
      _
    $region13: #{tpu_custom_call.1} parent=1 // pred_fallthru
      _
    // Predicated region
    $region14: #{tpu_custom_call.1} parent=1 // pred_check
      _
    $region15: #{tpu_custom_call.1} parent=1 // pred_check_branch
      %19 = sbr.rel (0) target = $region17
    $region16: #{tpu_custom_call.1} parent=1 // pred_region
      _
    $region17: #{tpu_custom_call.1} parent=1 // pred_fallthru
      _
    // Predicated region
    $region18: #{tpu_custom_call.1} parent=1 // pred_check
      _
    $region19: #{tpu_custom_call.1} parent=1 // pred_check_branch
      %21 = sbr.rel (0) target = $region21
    $region20: #{tpu_custom_call.1} parent=1 // pred_region
      _
    $region21: #{tpu_custom_call.1} parent=1 // pred_fallthru
      _
    // Predicated region
    $region22: #{tpu_custom_call.1} parent=1 // pred_check
      _
    $region23: #{tpu_custom_call.1} parent=1 // pred_check_branch
      %23 = sbr.rel (0) target = $region25
    $region24: #{tpu_custom_call.1} parent=1 // pred_region
      _
    $region25: #{tpu_custom_call.1} parent=1 // pred_fallthru
      _
    %p24 = scmp.eq.s32.totalorder 0, 0
    // Predicated region
    $region26: #{tpu_custom_call.1} parent=1 // pred_check
      %p25 = pneg %p24
    $region27: #{tpu_custom_call.1} parent=1 // pred_check_branch
      %27 = sbr.rel (%p25) target = $region29
    $region28: #{tpu_custom_call.1} parent=1 // pred_region
      %vm28 = vcmask 130048
      %29 = vst.msk [vmem:[#allocation2] sm:$0xff] %vm28, 0.0
      %vm30 = vcmask 7168
      %31 = vst.msk [vmem:[#allocation3] sm:$0xff] %vm30, 0.0
    $region29: #{tpu_custom_call.1} parent=1 // pred_fallthru
      _
    %v32 = vld [vmem:[%s0] sm:$0x3]
    %v33 = vlaneseq
    %v34 = vshrl.u32 %v33, 7
    %v35 = vperm.slane %v32, 0
    %v36 = vperm.slane %v32, 1
    %vm37 = vcmp.eq.s32.totalorder %v34, %v35
    %vm38 = vcmp.eq.s32.totalorder %v34, %v36
    %v39 = vsel %vm37, 1, 0
    %v40 = vsel %vm38, 1, 0
    %v41 = vcvt.s32.f32 %v39
    %v42 = vcvt.s32.f32 %v40
    %v43 = vpack.c.bf16 %v41, %v41
    %v44 = vpack.c.bf16 %v42, %v42
    %v45 = vld [vmem:[#allocation2] sm:$0xff]
    %v46 = vld [vmem:[%s1] sm:$0xf]
    %v47 = vld [vmem:[%s1 + $0x4] sm:$0xf]
    %v48 = vld [vmem:[%s1 + $0x8] sm:$0xf]
    %v49 = vld [vmem:[%s1 + $0xc] sm:$0xf]
    %v50 = vld [vmem:[%s1 + $0x10] sm:$0xf]
    %v51 = vld [vmem:[%s1 + $0x14] sm:$0xf]
    %v52 = vld [vmem:[%s1 + $0x18] sm:$0xf]
    %v53 = vld [vmem:[%s1 + $0x1c] sm:$0xf]
    %v54 = vld [vmem:[%s1 + $0x20] sm:$0xf]
    %v55 = vld [vmem:[%s1 + $0x24] sm:$0xf]
    %v56 = vld [vmem:[%s1 + $0x28] sm:$0xf]
    %v57 = vld [vmem:[%s1 + $0x2c] sm:$0xf]
    %v58 = vld [vmem:[%s1 + $0x30] sm:$0xf]
    %v59 = vld [vmem:[%s1 + $0x34] sm:$0xf]
    %v60 = vld [vmem:[%s1 + $0x38] sm:$0xf]
    %v61 = vld [vmem:[%s1 + $0x3c] sm:$0xf]
    %v62 = vld [vmem:[%s1 + $0x40] sm:$0xf]
    %v63 = vld [vmem:[%s1 + $0x44] sm:$0xf]
    %v64 = vld [vmem:[%s1 + $0x48] sm:$0xf]
    %v65 = vld [vmem:[%s1 + $0x4c] sm:$0xf]
    %v66 = vld [vmem:[%s1 + $0x50] sm:$0xf]
    %v67 = vld [vmem:[%s1 + $0x54] sm:$0xf]
    %v68 = vld [vmem:[%s1 + $0x58] sm:$0xf]
    %v69 = vld [vmem:[%s1 + $0x5c] sm:$0xf]
    %v70 = vld [vmem:[%s1 + $0x60] sm:$0xf]
    %v71 = vld [vmem:[%s1 + $0x64] sm:$0xf]
    %v72 = vld [vmem:[%s1 + $0x68] sm:$0xf]
    %v73 = vld [vmem:[%s1 + $0x6c] sm:$0xf]
    %v74 = vld [vmem:[%s1 + $0x70] sm:$0xf]
    %v75 = vld [vmem:[%s1 + $0x74] sm:$0xf]
    %v76 = vld [vmem:[%s1 + $0x78] sm:$0xf]
    %v77 = vld [vmem:[%s1 + $0x7c] sm:$0xf]
    %v110 = vunpack.c.l.b16 %v46
    %v111 = vunpack.c.l.b16 %v47
    %v112 = vunpack.c.l.b16 %v48
    %v113 = vunpack.c.l.b16 %v49
    %v114 = vunpack.c.l.b16 %v50
    %v115 = vunpack.c.l.b16 %v51
    %v116 = vunpack.c.l.b16 %v52
    %v117 = vunpack.c.l.b16 %v53
    %v118 = vunpack.c.l.b16 %v54
    %v119 = vunpack.c.l.b16 %v55
    %v120 = vunpack.c.l.b16 %v56
    %v121 = vunpack.c.l.b16 %v57
    %v122 = vunpack.c.l.b16 %v58
    %v123 = vunpack.c.l.b16 %v59
    %v124 = vunpack.c.l.b16 %v60
    %v125 = vunpack.c.l.b16 %v61
    %v126 = vunpack.c.l.b16 %v62
    %v127 = vunpack.c.l.b16 %v63
    %v128 = vunpack.c.l.b16 %v64
    %v129 = vunpack.c.l.b16 %v65
    %v130 = vunpack.c.l.b16 %v66
    %v131 = vunpack.c.l.b16 %v67
    %v132 = vunpack.c.l.b16 %v68
    %v133 = vunpack.c.l.b16 %v69
    %v134 = vunpack.c.l.b16 %v70
    %v135 = vunpack.c.l.b16 %v71
    %v136 = vunpack.c.l.b16 %v72
    %v137 = vunpack.c.l.b16 %v73
    %v138 = vunpack.c.l.b16 %v74
    %v139 = vunpack.c.l.b16 %v75
    %v140 = vunpack.c.l.b16 %v76
    %v141 = vunpack.c.l.b16 %v77
    %v142 = vpack.c.b16 %v111, %v110
    %v143 = vpack.c.b16 %v113, %v112
    %v144 = vpack.c.b16 %v115, %v114
    %v145 = vpack.c.b16 %v117, %v116
    %v146 = vpack.c.b16 %v119, %v118
    %v147 = vpack.c.b16 %v121, %v120
    %v148 = vpack.c.b16 %v123, %v122
    %v149 = vpack.c.b16 %v125, %v124
    %v150 = vpack.c.b16 %v127, %v126
    %v151 = vpack.c.b16 %v129, %v128
    %v152 = vpack.c.b16 %v131, %v130
    %v153 = vpack.c.b16 %v133, %v132
    %v154 = vpack.c.b16 %v135, %v134
    %v155 = vpack.c.b16 %v137, %v136
    %v156 = vpack.c.b16 %v139, %v138
    %v157 = vpack.c.b16 %v141, %v140
    %174 = vmatpush.bf16.msra.mxu0 %v149
    %175 = vmatpush.bf16.msra.mxu0 %v148
    %176 = vmatpush.bf16.msra.mxu0 %v147
    %177 = vmatpush.bf16.msra.mxu0 %v146
    %178 = vmatpush.bf16.msra.mxu0 %v145
    %179 = vmatpush.bf16.msra.mxu0 %v144
    %180 = vmatpush.bf16.msra.mxu0 %v143
    %181 = vmatpush.bf16.msra.mxu0 %v142
    %182 = vmatmul.bf16.gmra.mxu0 %v43
    %v183 = vpop.f32.mrf.mxu0
    %v184 = vadd.f32 0.0, %v183
    %v185 = vpop.f32.mrf.mxu0
    %186 = vdwg.mxu0
    %187 = vmatpush.bf16.msra.mxu0 %v157
    %188 = vmatpush.bf16.msra.mxu0 %v156
    %189 = vmatpush.bf16.msra.mxu0 %v155
    %190 = vmatpush.bf16.msra.mxu0 %v154
    %191 = vmatpush.bf16.msra.mxu0 %v153
    %192 = vmatpush.bf16.msra.mxu0 %v152
    %193 = vmatpush.bf16.msra.mxu0 %v151
    %194 = vmatpush.bf16.msra.mxu0 %v150
    %195 = vmatmul.bf16.gmra.mxu0 %v44
    %v196 = vpop.f32.mrf.mxu0
    %v197 = vadd.f32 %v184, %v196
    %v198 = vpop.f32.mrf.mxu0
    %199 = vdwg.mxu0
    %v200 = vadd.f32 %v45, %v197
    %vm201 = vcmask 130048
    %202 = vst.msk [vmem:[#allocation2] sm:$0xff] %vm201, %v200
    %v203 = vld [vmem:[#allocation3] sm:$0xff]
    %v204 = vadd.f32 %v41, %v42
    %205 = vadd.xlane.f32.xlu0 %v204
    %v206 = vpop.xlane.xlu0 %205
    %v207 = vadd.f32 %v203, %v206
    %vm208 = vcmask 7168
    %209 = vst.msk [vmem:[#allocation3] sm:$0xff] %vm208, %v207
    // Predicated region
    $region30: #{tpu_custom_call.1} parent=1 // pred_check
      %p210 = pneg %p24
    $region31: #{tpu_custom_call.1} parent=1 // pred_check_branch
      %212 = sbr.rel (%p210) target = $region33
    $region32: #{tpu_custom_call.1} parent=1 // pred_region
      %v213 = vld [vmem:[#allocation3] sm:$0xff]
      %v214 = vmax.f32 %v213, 1.0
      %v215 = vrcp.pop %v214
      %v216 = vld [vmem:[#allocation2] sm:$0xff]
      %218 = vset.pattern.permute.xlu0 0
      %219 = vperm.xlu0 %218, %v215
      %v220 = vpop.permute.xlu0 %219
      %v222 = vmul.f32 %v216, %v220
      %v223 = vld [vmem:[%s2] sm:$0xff]
      %v224 = vld [vmem:[%s2 + $0x8] sm:$0xff]
      %v225 = vld [vmem:[%s3] sm:$0x1]
      %v227 = vperm.slane %v225, 0
      %v230 = vsel %vm201, %v222, 0
      %232 = vmatpush.msra.mxu0 0.0
      %233 = vmatpush.msra.mxu0 0.0
      %234 = vmatpush.msra.mxu0 0.0
      %235 = vmatpush.msra.mxu0 0.0
      %236 = vmatpush.msra.mxu0 0.0
      %237 = vmatpush.msra.mxu0 0.0
      %238 = vmatpush.msra.mxu0 0.0
      %239 = vmatpush.msra.mxu0 0.0
      %240 = vmatpush.msra.mxu0 0.0
      %241 = vmatpush.msra.mxu0 0.0
      %242 = vmatpush.msra.mxu0 0.0
      %243 = vmatpush.msra.mxu0 0.0
      %244 = vmatpush.msra.mxu0 0.0
      %245 = vmatpush.msra.mxu0 0.0
      %246 = vmatpush.msra.mxu0 %v224
      %247 = vmatpush.msra.mxu0 %v223
      %248 = vmatmul.f32.gmra.mxu0 %v230
      %v249 = vpop.f32.mrf.mxu0
      %v250 = vadd.f32 %v227, %v249
      %251 = vdwg.mxu0
      %v252 = vmax.f32 %v250, 0.0
      %v253 = vld [vmem:[%s4] sm:$0xff]
      %v254 = vld [vmem:[%s4 + $0x8] sm:$0xff]
      %v255 = vld [vmem:[%s4 + $0x10] sm:$0xff]
      %v256 = vld [vmem:[%s4 + $0x18] sm:$0xff]
      %v257 = vld [vmem:[%s5] sm:$0x1]
      %v259 = vperm.slane %v257, 0
      %vm261 = vcmask 261120
      %v263 = vsel %vm261, %v252, 0
      %265 = vmatpush.msra.mxu0 0.0
      %266 = vmatpush.msra.mxu0 0.0
      %267 = vmatpush.msra.mxu0 0.0
      %268 = vmatpush.msra.mxu0 0.0
      %269 = vmatpush.msra.mxu0 0.0
      %270 = vmatpush.msra.mxu0 0.0
      %271 = vmatpush.msra.mxu0 0.0
      %272 = vmatpush.msra.mxu0 0.0
      %273 = vmatpush.msra.mxu0 0.0
      %274 = vmatpush.msra.mxu0 0.0
      %275 = vmatpush.msra.mxu0 0.0
      %276 = vmatpush.msra.mxu0 0.0
      %277 = vmatpush.msra.mxu0 %v256
      %278 = vmatpush.msra.mxu0 %v255
      %279 = vmatpush.msra.mxu0 %v254
      %280 = vmatpush.msra.mxu0 %v253
      %281 = vmatmul.f32.gmra.mxu0 %v263
      %v282 = vpop.f32.mrf.mxu0
      %v283 = vadd.f32 %v259, %v282
      %284 = vdwg.mxu0
      %285 = vst [vmem:[#allocation4] sm:$0xff] %v283
    $region33: #{tpu_custom_call.1} parent=1 // pred_fallthru
      _
    // Predicated region
    $region34: #{tpu_custom_call.1} parent=1 // pred_check
      _
    $region35: #{tpu_custom_call.1} parent=1 // pred_check_branch
      %287 = sbr.rel (0) target = $region37
    $region36: #{tpu_custom_call.1} parent=1 // pred_region
      %289 = vsyncadd [#allocation5], 0
      %s291 = sshll.u32 [#allocation4], 4
      %s292 = int_to_ptr.vmem [resolvable:$true] %s291
      %s293 = sshll.u32 %s6, 4
      %s294 = int_to_ptr.hbm [resolvable:$true] %s293
      %296 = dma.vmem_to_hbm [thread:$0]  %s292, 128, %s294, [#allocation5]
    $region37: #{tpu_custom_call.1} parent=1 // pred_fallthru
      _
    // Predicated region
    $region38: #{tpu_custom_call.1} parent=1 // pred_check
      _
    $region39: #{tpu_custom_call.1} parent=1 // pred_check_branch
      %298 = sbr.rel (0) target = $region41
    $region40: #{tpu_custom_call.1} parent=1 // pred_region
      %300 = dma.done [#allocation5], 128
    $region41: #{tpu_custom_call.1} parent=1 // pred_fallthru
      _
    %301 = vsyncpa [#allocation5], 1

</llo_original>
